<compile_context>
chip_gen: v7x
topology: tpu7x:2x2x1
jax: 0.10.0
libtpu: 0.0.40
codegen_flags: <defaults>
</compile_context>

<pallas_src>
import functools

import jax
import jax.numpy as jnp
from jax.experimental import pallas as pl
from jax.experimental.pallas import tpu as pltpu

HP = 128  # hidden width padded to the full 128-lane width (real hidden_dim < HP)


def _round_up(x, m):
    return (x + m - 1) // m * m


def _critic_kernel(x_ref, p_ref, o_ref, *, sd, sdp):
    # x_ref: (tb, sd)  f32 state tile (tb multiple of 128)
    # p_ref: (sdp + HP + 16, HP) packed f32 params (resident across grid steps)
    # o_ref: (1, 1, tb) f32 lane-dense value slab
    x = x_ref[...]                                        # f32

    w1 = p_ref[0:sd, :]                                   # (sd, HP)
    w2 = p_ref[sdp:sdp + HP, :]                           # (HP, HP)  (b2 folded in)
    b1 = p_ref[sdp + HP:sdp + HP + 1, :]                  # (1, HP)   lane hidden == 1.0
    w3 = p_ref[sdp + HP + 8:sdp + HP + 9, :]              # (1, HP)   lane hidden == b3

    # Layer 1: bf16 MXU, f32 accumulate; bias add + ReLU on the VPU in f32.
    h1 = jnp.dot(x.astype(jnp.bfloat16), w1.astype(jnp.bfloat16),
                 preferred_element_type=jnp.float32)
    h1 = jnp.maximum(h1 + b1, 0.0)                        # h1[:, hidden] == 1.0

    # Layer 2: bf16 MXU; b2 arrives through the constant-1 hidden unit.
    h2 = jnp.dot(h1.astype(jnp.bfloat16), w2.astype(jnp.bfloat16),
                 preferred_element_type=jnp.float32)
    h2 = jnp.maximum(h2, 0.0)                             # h2[:, hidden] == 1.0

    # Value head: VPU multiply + XLU transpose + sublane reduce.
    # b3 arrives through lane `hidden` of w3.  Result is lane-dense (1, tb).
    g = h2 * w3                                           # (tb, HP) f32
    v = jnp.sum(jnp.transpose(g, (1, 0)), axis=0, keepdims=True)   # (1, tb)
    o_ref[...] = v.reshape(o_ref.shape).astype(o_ref.dtype)


def pack_critic_params(params, state_dim, hidden_dim=64):
    """Pack w1,b1,w2,b2,w3,b3 into one lane-padded f32 buffer (sdp+HP+16, HP).

    Row layout (all blocks 8-row aligned):
      [0:sdp]            W1 zero-padded (column `hidden_dim` is all zero)
      [sdp:sdp+128]      W2 zero-padded, row hidden_dim = b2, [hidden,hidden] = 1
      [sdp+128:+136]     row 0 = b1 (lane hidden_dim = 1.0), rest zero
      [sdp+136:+144]     row 0 = w3 (lane hidden_dim = b3),  rest zero
    """
    assert hidden_dim < HP, "need a spare lane for the constant-1 hidden unit"
    sdp = _round_up(max(state_dim, 1), 8)
    f32 = jnp.float32

    w1 = jnp.asarray(params["w1"], f32)
    b1 = jnp.asarray(params["b1"], f32).reshape(-1)
    w2 = jnp.asarray(params["w2"], f32)
    b2 = jnp.asarray(params["b2"], f32).reshape(-1)
    w3 = jnp.asarray(params["w3"], f32).reshape(-1)
    b3 = jnp.asarray(params["b3"], f32).reshape(())

    w1p = jnp.zeros((sdp, HP), f32).at[:state_dim, :hidden_dim].set(w1)
    w2p = (jnp.zeros((HP, HP), f32)
           .at[:hidden_dim, :hidden_dim].set(w2)
           .at[hidden_dim, :hidden_dim].set(b2)       # fold b2 into the matmul
           .at[hidden_dim, hidden_dim].set(1.0))      # keep constant-1 unit alive
    b1p = jnp.zeros((HP,), f32).at[:hidden_dim].set(b1).at[hidden_dim].set(1.0)
    w3p = jnp.zeros((HP,), f32).at[:hidden_dim].set(w3).at[hidden_dim].set(b3)

    b1_blk = jnp.zeros((8, HP), f32).at[0].set(b1p)
    w3_blk = jnp.zeros((8, HP), f32).at[0].set(w3p)
    return jnp.concatenate([w1p, w2p, b1_blk, w3_blk], axis=0)


def _pick_batch_tile(B, sdp, *, vmem_budget=10 << 20, max_tile=4096):
    """Derive a batch tile from a VMEM budget; multiple of 128, v7x-safe."""
    per_row = (2 * sdp * 4        # input tile (double-buffered f32)
               + sdp * 2          # bf16 cast of the input
               + 4 * HP * 4       # h1, h2, h2*w3, transposed slab (f32)
               + 2 * HP * 2       # bf16 casts of h1 / weights staging
               + 2 * 4)           # output slab (double-buffered)
    tb = max(128, min(vmem_budget // per_row, max_tile))
    tb = (tb // 128) * 128
    tb = min(tb, _round_up(B, 128))
    # v7x megacore: if everything fits one tile but the batch is big, split in
    # two so the "parallel" batch axis can shard across both TensorCores.
    if tb >= 256 and _round_up(B, tb) // tb == 1:
        half = _round_up((B + 1) // 2, 128)
        if half >= 128:
            tb = half
    return tb


def critic_forward(state, packed_params, *, max_batch_tile=4096):
    """state: (B, state_dim). packed_params: output of pack_critic_params."""
    B, sd = state.shape
    rows, lanes = packed_params.shape
    assert lanes == HP
    sdp = rows - HP - 16
    assert sdp >= sd, "packed params do not match state_dim"

    tb = _pick_batch_tile(B, sdp, max_tile=max_batch_tile)
    bp = _round_up(B, tb)
    nt = bp // tb

    x = state.astype(jnp.float32)
    if bp != B:
        # Pad only the batch dimension; feature dim stays at the true state_dim.
        x = jnp.zeros((bp, sd), jnp.float32).at[:B].set(x)

    kernel = functools.partial(_critic_kernel, sd=sd, sdp=sdp)

    flops = 2 * bp * (sd * HP + HP * HP + HP)
    bytes_accessed = bp * sd * 4 + rows * HP * 4 + bp * 4

    out = pl.pallas_call(
        kernel,
        out_shape=jax.ShapeDtypeStruct((nt, 1, tb), jnp.float32),
        grid=(nt,),
        in_specs=[
            pl.BlockSpec((tb, sd), lambda i: (i, 0)),        # state tile (double-buffered)
            pl.BlockSpec((rows, HP), lambda i: (0, 0)),      # packed params, resident
        ],
        out_specs=pl.BlockSpec((1, 1, tb), lambda i: (i, 0, 0)),  # lane-dense value slab
        compiler_params=pltpu.CompilerParams(
            dimension_semantics=("parallel",),               # batch tiles shard across TCs
            vmem_limit_bytes=32 * 1024 * 1024,               # safe headroom on v7x 64 MiB
        ),
        cost_estimate=pl.CostEstimate(
            flops=flops, transcendentals=0, bytes_accessed=bytes_accessed),
    )(x, packed_params)
    return out.reshape(bp)[:B].reshape(B, 1)


def init_critic_params(key, state_dim, hidden_dim=64):
    """Deterministic init mimicking PyTorch nn.Linear default (U[-1/sqrt(fan_in), ..])."""
    ks = jax.random.split(key, 6)

    def linear(kw, kb, fan_in, fan_out):
        bound = 1.0 / jnp.sqrt(jnp.float32(fan_in))
        w = jax.random.uniform(kw, (fan_in, fan_out), jnp.float32, -bound, bound)
        b = jax.random.uniform(kb, (1, fan_out), jnp.float32, -bound, bound)
        return w, b

    w1, b1 = linear(ks[0], ks[1], state_dim, hidden_dim)
    w2, b2 = linear(ks[2], ks[3], hidden_dim, hidden_dim)
    w3, b3 = linear(ks[4], ks[5], hidden_dim, 1)
    return {"w1": w1, "b1": b1, "w2": w2, "b2": b2, "w3": w3, "b3": b3}


if __name__ == "__main__":
    key = jax.random.PRNGKey(0)
    k_state, k_params = jax.random.split(key)

    B, STATE_DIM, HIDDEN = 8, 8, 64
    state = jax.random.normal(k_state, (B, STATE_DIM), dtype=jnp.float32)
    params = init_critic_params(k_params, STATE_DIM, HIDDEN)
    packed = pack_critic_params(params, STATE_DIM, HIDDEN)

    value = critic_forward(state, packed)
    jax.block_until_ready(value)

    # Reference check in plain JAX (same math as the PyTorch Sequential).
    h1 = jnp.maximum(state @ params["w1"] + params["b1"], 0.0)
    h2 = jnp.maximum(h1 @ params["w2"] + params["b2"], 0.0)
    ref = h2 @ params["w3"] + params["b3"]

    assert value.shape == (B, 1)
    # bf16 MXU operands -> relaxed tolerance vs the pure-f32 reference.
    assert jnp.allclose(value, ref, atol=2e-2, rtol=2e-2), (value, ref)

    print("KERNEL_OK")
</pallas_src>

<mosaic_0001>
module attributes {stable_mosaic.version = 11 : i64} {
  func.func @_critic_kernel(%arg0: i32, %arg1: memref<128x8xf32, #tpu.memory_space<vmem>>, %arg2: memref<152x128xf32, #tpu.memory_space<vmem>>, %arg3: memref<1x1x128xf32, #tpu.memory_space<vmem>>) attributes {dimension_semantics = [#tpu.dimension_semantics<parallel>], iteration_bounds = array<i64: 1>, scalar_prefetch = 0 : i64, scratch_operands = 0 : i64, tpu.core_type = #tpu.core_type<tc>, window_params = [{transform_indices = @transform_0, window_bounds = array<i64: 128, 8>}, {pipeline_mode = #tpu.pipeline_mode<synchronous>, transform_indices = @transform_1, window_bounds = array<i64: 152, 128>}, {transform_indices = @transform_2, window_bounds = array<i64: 1, 1, 128>}]} {
    %c0 = arith.constant 0 : index
    %c0_0 = arith.constant 0 : index
    %0 = vector.load %arg1[%c0, %c0_0] : memref<128x8xf32, #tpu.memory_space<vmem>>, vector<128x8xf32>
    %c0_1 = arith.constant 0 : index
    %c0_2 = arith.constant 0 : index
    %1 = vector.load %arg2[%c0_1, %c0_2] : memref<152x128xf32, #tpu.memory_space<vmem>>, vector<8x128xf32>
    %c8 = arith.constant 8 : index
    %c0_3 = arith.constant 0 : index
    %2 = vector.load %arg2[%c8, %c0_3] : memref<152x128xf32, #tpu.memory_space<vmem>>, vector<128x128xf32>
    %c136 = arith.constant 136 : index
    %c0_4 = arith.constant 0 : index
    %3 = vector.load %arg2[%c136, %c0_4] : memref<152x128xf32, #tpu.memory_space<vmem>>, vector<1x128xf32>
    %c144 = arith.constant 144 : index
    %c0_5 = arith.constant 0 : index
    %4 = vector.load %arg2[%c144, %c0_5] : memref<152x128xf32, #tpu.memory_space<vmem>>, vector<1x128xf32>
    %5 = arith.truncf %0 : vector<128x8xf32> to vector<128x8xbf16>
    %6 = arith.truncf %1 : vector<8x128xf32> to vector<8x128xbf16>
    %cst = arith.constant dense<0.000000e+00> : vector<128x128xf32>
    %7 = tpu.matmul %5, %6, %cst {dimension_numbers = #tpu.dot_dimension_numbers<[1], [0], [0], [1], [0, 0, 1, 1], [], []>} : vector<128x8xbf16>, vector<8x128xbf16>, vector<128x128xf32> -> vector<128x128xf32>
    %8 = vector.broadcast %3 : vector<1x128xf32> to vector<128x128xf32>
    %9 = arith.addf %7, %8 : vector<128x128xf32>
    %cst_6 = arith.constant 0.000000e+00 : f32
    %10 = vector.broadcast %cst_6 : f32 to vector<128x128xf32>
    %11 = arith.maximumf %9, %10 : vector<128x128xf32>
    %12 = arith.truncf %11 : vector<128x128xf32> to vector<128x128xbf16>
    %13 = arith.truncf %2 : vector<128x128xf32> to vector<128x128xbf16>
    %cst_7 = arith.constant dense<0.000000e+00> : vector<128x128xf32>
    %14 = tpu.matmul %12, %13, %cst_7 {dimension_numbers = #tpu.dot_dimension_numbers<[1], [0], [0], [1], [0, 0, 1, 1], [], []>} : vector<128x128xbf16>, vector<128x128xbf16>, vector<128x128xf32> -> vector<128x128xf32>
    %cst_8 = arith.constant 0.000000e+00 : f32
    %15 = vector.broadcast %cst_8 : f32 to vector<128x128xf32>
    %16 = arith.maximumf %14, %15 : vector<128x128xf32>
    %17 = vector.broadcast %4 : vector<1x128xf32> to vector<128x128xf32>
    %18 = arith.mulf %16, %17 : vector<128x128xf32>
    %19 = tpu.transpose %18, [1, 0] : vector<128x128xf32> -> vector<128x128xf32>
    %cst_9 = arith.constant dense<0.000000e+00> : vector<128xf32>
    %20 = vector.multi_reduction <add>, %19, %cst_9 [0] : vector<128x128xf32> to vector<128xf32>
    %21 = vector.shape_cast %20 : vector<128xf32> to vector<1x128xf32>
    %22 = vector.shape_cast %21 : vector<1x128xf32> to vector<1x1x128xf32>
    %c0_10 = arith.constant 0 : index
    %c0_11 = arith.constant 0 : index
    %c0_12 = arith.constant 0 : index
    %23 = vector.load %arg3[%c0_10, %c0_11, %c0_12] : memref<1x1x128xf32, #tpu.memory_space<vmem>>, vector<1x1x128xf32>
    tpu.vector_store %arg3[%c0_10, %c0_11, %c0_12], %22 {strides = array<i32>} : memref<1x1x128xf32, #tpu.memory_space<vmem>>, vector<1x1x128xf32>,
    return
  }
  func.func @transform_0(%arg0: i32) -> (i32, i32) {
    %c0_i32 = arith.constant 0 : i32
    %c0_i32_0 = arith.constant 0 : i32
    return %arg0, %c0_i32 : i32, i32
  }
  func.func @transform_1(%arg0: i32) -> (i32, i32) {
    %c0_i32 = arith.constant 0 : i32
    %c0_i32_0 = arith.constant 0 : i32
    %c0_i32_1 = arith.constant 0 : i32
    return %c0_i32, %c0_i32_0 : i32, i32
  }
  func.func @transform_2(%arg0: i32) -> (i32, i32, i32) {
    %c0_i32 = arith.constant 0 : i32
    %c0_i32_0 = arith.constant 0 : i32
    %c0_i32_1 = arith.constant 0 : i32
    return %arg0, %c0_i32, %c0_i32_0 : i32, i32, i32
  }
}

</mosaic_0001>

<llo_original>
// kernel: tpu_custom_call.1
$region0: #{tpu_custom_call.1}
  #allocation0 [shape = 'u32[]', space=smem, size = 0x4, offset = 0x4, fixed_abs, tag = 'smem constant byte address 0x4 - core index']
  #allocation1 [shape = 'u32[144,128]{1,0:T(1,128)}', space=vmem, size = 0x12000, scoped, tag = 'internal scratch']
  %s0 = inlined_call_operand.vmem [shape: f32[128,8], index: 0, kind: input, shape index: {}]
  %s1 = inlined_call_operand.hbm [shape: f32[152,128], index: 1, kind: input, shape index: {}]
  %s2 = inlined_call_operand.hbm [shape: f32[1,1,128], index: 2, kind: output, shape index: {}]
  %s3 = sld [smem:[#allocation0]]
  $region22: #{tpu_custom_call.1} parent=0
    _
  %s5 = ssub.s32 1, %s3
  %s6 = scalar_select 0, %s5, %s3
  $region1: #{tpu_custom_call.1} parent=0
    #allocation2 [shape = 'u8[77824]{0}', space=vmem, size = 0x13000, scoped, tag = 'input window, operand 1, single buffered']
    #allocation3 [shape = 's32[1]{0}', space=sflag, size = 0x4, scoped, tag = 'scoped memory for tpu_custom_call.1']
    #allocation4 [shape = 's32[1]{0}', space=sflag, size = 0x4, scoped, tag = 'scoped memory for tpu_custom_call.1']
    #allocation5 [shape = 'u8[512]{0}', space=vmem, size = 0x400, scoped, tag = 'output window, operand 0, single buffered']
    %7 = vsyncpa [#allocation3], 0
    %8 = vsyncpa [#allocation4], 0
    // Predicated region
    $region2: #{tpu_custom_call.1} parent=1 // pred_check
      _
    $region3: #{tpu_custom_call.1} parent=1 // pred_check_branch
      %10 = sbr.rel (0) target = $region5
    $region4: #{tpu_custom_call.1} parent=1 // pred_region
      _
    $region5: #{tpu_custom_call.1} parent=1 // pred_fallthru
      _
    // Predicated region
    $region6: #{tpu_custom_call.1} parent=1 // pred_check
      _
    $region7: #{tpu_custom_call.1} parent=1 // pred_check_branch
      %12 = sbr.rel (0) target = $region9
    $region8: #{tpu_custom_call.1} parent=1 // pred_region
      %s14 = ssub.s32 2432, 2432
      %15 = vsyncadd [#allocation3], %s14
      %s16 = sshll.u32 [#allocation2], 4
      %s17 = int_to_ptr.vmem [resolvable:$true] %s16
      %22 = dma.hbm_to_vmem [thread:$0]  %s1, 2432, %s17, [#allocation3], 128, 128, 8
    $region9: #{tpu_custom_call.1} parent=1 // pred_fallthru
      _
    // Predicated region
    $region10: #{tpu_custom_call.1} parent=1 // pred_check
      _
    $region11: #{tpu_custom_call.1} parent=1 // pred_check_branch
      %24 = sbr.rel (0) target = $region13
    $region12: #{tpu_custom_call.1} parent=1 // pred_region
      %25 = dma.done [#allocation3], 2432
    $region13: #{tpu_custom_call.1} parent=1 // pred_fallthru
      _
    %v27 = vld [vmem:[%s0] sm:$0xff]
    %v28 = vld [vmem:[%s0 + $0x8] sm:$0xff]
    %v29 = vld [vmem:[%s0 + $0x10] sm:$0xff]
    %v30 = vld [vmem:[%s0 + $0x18] sm:$0xff]
    %v31 = vld [vmem:[%s0 + $0x20] sm:$0xff]
    %v32 = vld [vmem:[%s0 + $0x28] sm:$0xff]
    %v33 = vld [vmem:[%s0 + $0x30] sm:$0xff]
    %v34 = vld [vmem:[%s0 + $0x38] sm:$0xff]
    %v35 = vld [vmem:[%s0 + $0x40] sm:$0xff]
    %v36 = vld [vmem:[%s0 + $0x48] sm:$0xff]
    %v37 = vld [vmem:[%s0 + $0x50] sm:$0xff]
    %v38 = vld [vmem:[%s0 + $0x58] sm:$0xff]
    %v39 = vld [vmem:[%s0 + $0x60] sm:$0xff]
    %v40 = vld [vmem:[%s0 + $0x68] sm:$0xff]
    %v41 = vld [vmem:[%s0 + $0x70] sm:$0xff]
    %v42 = vld [vmem:[%s0 + $0x78] sm:$0xff]
    %v43 = vld [vmem:[#allocation2] sm:$0xff]
    %v44 = vld [vmem:[#allocation2 + $0x8] sm:$0xff]
    %v45 = vld [vmem:[#allocation2 + $0x10] sm:$0xff]
    %v46 = vld [vmem:[#allocation2 + $0x18] sm:$0xff]
    %v47 = vld [vmem:[#allocation2 + $0x20] sm:$0xff]
    %v48 = vld [vmem:[#allocation2 + $0x28] sm:$0xff]
    %v49 = vld [vmem:[#allocation2 + $0x30] sm:$0xff]
    %v50 = vld [vmem:[#allocation2 + $0x38] sm:$0xff]
    %v51 = vld [vmem:[#allocation2 + $0x40] sm:$0xff]
    %v52 = vld [vmem:[#allocation2 + $0x48] sm:$0xff]
    %v53 = vld [vmem:[#allocation2 + $0x50] sm:$0xff]
    %v54 = vld [vmem:[#allocation2 + $0x58] sm:$0xff]
    %v55 = vld [vmem:[#allocation2 + $0x60] sm:$0xff]
    %v56 = vld [vmem:[#allocation2 + $0x68] sm:$0xff]
    %v57 = vld [vmem:[#allocation2 + $0x70] sm:$0xff]
    %v58 = vld [vmem:[#allocation2 + $0x78] sm:$0xff]
    %v59 = vld [vmem:[#allocation2 + $0x80] sm:$0xff]
    %v60 = vld [vmem:[#allocation2 + $0x88] sm:$0x1]
    %v61 = vld [vmem:[#allocation2 + $0x90] sm:$0x1]
    %v62 = vpack.c.bf16 %v28, %v27
    %v63 = vpack.c.bf16 %v30, %v29
    %v64 = vpack.c.bf16 %v32, %v31
    %v65 = vpack.c.bf16 %v34, %v33
    %v66 = vpack.c.bf16 %v36, %v35
    %v67 = vpack.c.bf16 %v38, %v37
    %v68 = vpack.c.bf16 %v40, %v39
    %v69 = vpack.c.bf16 %v42, %v41
    %v70 = vpack.c.bf16 %v43, %v43
    %v71 = vlaneseq
    %v72 = vshrl.u32 %v71, 7
    %v73 = vsub.s32 0, %v72
    %v74 = vrot.slane %v60, %v73
    %vm75 = vcmask 64512
    %v77 = vsel %vm75, %v62, 0
    %v80 = vsel %vm75, %v63, 0
    %v83 = vsel %vm75, %v64, 0
    %v86 = vsel %vm75, %v65, 0
    %v89 = vsel %vm75, %v66, 0
    %v92 = vsel %vm75, %v67, 0
    %v95 = vsel %vm75, %v68, 0
    %v98 = vsel %vm75, %v69, 0
    %vm100 = vcmask 1043456
    %v102 = vsel %vm100, %v70, 0
    %104 = vmatprep.subr.bf16.mxu0 0
    %105 = vmatpush1.bf16.msra.mxu0 %v102
    %106 = vmatprep.subr.bf16.mxu0 0
    %107 = vmatpush1.bf16.msra.mxu0 0
    %108 = vmatprep.subr.bf16.mxu0 0
    %109 = vmatpush1.bf16.msra.mxu0 0
    %110 = vmatprep.subr.bf16.mxu0 0
    %111 = vmatpush1.bf16.msra.mxu0 0
    %112 = vmatprep.subr.bf16.mxu0 0
    %113 = vmatpush1.bf16.msra.mxu0 0
    %114 = vmatprep.subr.bf16.mxu0 0
    %115 = vmatpush1.bf16.msra.mxu0 0
    %116 = vmatprep.subr.bf16.mxu0 0
    %117 = vmatpush1.bf16.msra.mxu0 0
    %118 = vmatprep.subr.bf16.mxu0 0
    %119 = vmatpush1.bf16.msra.mxu0 0
    %120 = vmatprep.subr.bf16.mxu0 0
    %121 = vmatpush1.bf16.msra.mxu0 0
    %122 = vmatprep.subr.bf16.mxu0 0
    %123 = vmatpush1.bf16.msra.mxu0 0
    %124 = vmatprep.subr.bf16.mxu0 0
    %125 = vmatpush1.bf16.msra.mxu0 0
    %126 = vmatprep.subr.bf16.mxu0 0
    %127 = vmatpush1.bf16.msra.mxu0 0
    %128 = vmatprep.subr.bf16.mxu0 0
    %129 = vmatpush1.bf16.msra.mxu0 0
    %130 = vmatprep.subr.bf16.mxu0 0
    %131 = vmatpush1.bf16.msra.mxu0 0
    %132 = vmatprep.subr.bf16.mxu0 0
    %133 = vmatpush1.bf16.msra.mxu0 0
    %134 = vmatprep.subr.bf16.mxu0 0
    %135 = vmatpush1.bf16.msra.mxu0 0
    %136 = vmatprep.mubr.bf16.mxu0 0
    %137 = vmatmul.mubr.bf16.gmra.mrb[0].mxu0 %v77
    %v138 = vpop.f32.mrb[0].mxu0
    %v139 = vadd.f32 %v74, %v138
    %v140 = vpop.f32.mrb[0].mxu0
    %v141 = vpop.f32.mrb[0].mxu0
    %v142 = vadd.f32 %v74, %v141
    %v143 = vpop.f32.mrb[0].mxu0
    %144 = vmatprep.mubr.bf16.mxu0 0
    %145 = vmatmul.mubr.bf16.gmra.mrb[0].mxu0 %v80
    %v146 = vpop.f32.mrb[0].mxu0
    %v147 = vadd.f32 %v74, %v146
    %v148 = vpop.f32.mrb[0].mxu0
    %v149 = vpop.f32.mrb[0].mxu0
    %v150 = vadd.f32 %v74, %v149
    %v151 = vpop.f32.mrb[0].mxu0
    %152 = vmatprep.mubr.bf16.mxu0 0
    %153 = vmatmul.mubr.bf16.gmra.mrb[0].mxu0 %v83
    %v154 = vpop.f32.mrb[0].mxu0
    %v155 = vadd.f32 %v74, %v154
    %v156 = vpop.f32.mrb[0].mxu0
    %v157 = vpop.f32.mrb[0].mxu0
    %v158 = vadd.f32 %v74, %v157
    %v159 = vpop.f32.mrb[0].mxu0
    %160 = vmatprep.mubr.bf16.mxu0 0
    %161 = vmatmul.mubr.bf16.gmra.mrb[0].mxu0 %v86
    %v162 = vpop.f32.mrb[0].mxu0
    %v163 = vadd.f32 %v74, %v162
    %v164 = vpop.f32.mrb[0].mxu0
    %v165 = vpop.f32.mrb[0].mxu0
    %v166 = vadd.f32 %v74, %v165
    %v167 = vpop.f32.mrb[0].mxu0
    %168 = vmatprep.mubr.bf16.mxu0 0
    %169 = vmatmul.mubr.bf16.gmra.mrb[0].mxu0 %v89
    %v170 = vpop.f32.mrb[0].mxu0
    %v171 = vadd.f32 %v74, %v170
    %v172 = vpop.f32.mrb[0].mxu0
    %v173 = vpop.f32.mrb[0].mxu0
    %v174 = vadd.f32 %v74, %v173
    %v175 = vpop.f32.mrb[0].mxu0
    %176 = vmatprep.mubr.bf16.mxu0 0
    %177 = vmatmul.mubr.bf16.gmra.mrb[0].mxu0 %v92
    %v178 = vpop.f32.mrb[0].mxu0
    %v179 = vadd.f32 %v74, %v178
    %v180 = vpop.f32.mrb[0].mxu0
    %v181 = vpop.f32.mrb[0].mxu0
    %v182 = vadd.f32 %v74, %v181
    %v183 = vpop.f32.mrb[0].mxu0
    %184 = vmatprep.mubr.bf16.mxu0 0
    %185 = vmatmul.mubr.bf16.gmra.mrb[0].mxu0 %v95
    %v186 = vpop.f32.mrb[0].mxu0
    %v187 = vadd.f32 %v74, %v186
    %v188 = vpop.f32.mrb[0].mxu0
    %v189 = vpop.f32.mrb[0].mxu0
    %v190 = vadd.f32 %v74, %v189
    %v191 = vpop.f32.mrb[0].mxu0
    %192 = vmatprep.mubr.bf16.mxu0 0
    %193 = vmatmul.mubr.bf16.gmra.mrb[0].mxu0 %v98
    %v194 = vpop.f32.mrb[0].mxu0
    %v195 = vadd.f32 %v74, %v194
    %v196 = vpop.f32.mrb[0].mxu0
    %v197 = vpop.f32.mrb[0].mxu0
    %v198 = vadd.f32 %v74, %v197
    %v199 = vpop.f32.mrb[0].mxu0
    %200 = vdwg.mxu0
    %v201 = vmax.f32 %v139, 0.0
    %v202 = vmax.f32 %v142, 0.0
    %v203 = vmax.f32 %v147, 0.0
    %v204 = vmax.f32 %v150, 0.0
    %v205 = vmax.f32 %v155, 0.0
    %v206 = vmax.f32 %v158, 0.0
    %v207 = vmax.f32 %v163, 0.0
    %v208 = vmax.f32 %v166, 0.0
    %v209 = vmax.f32 %v171, 0.0
    %v210 = vmax.f32 %v174, 0.0
    %v211 = vmax.f32 %v179, 0.0
    %v212 = vmax.f32 %v182, 0.0
    %v213 = vmax.f32 %v187, 0.0
    %v214 = vmax.f32 %v190, 0.0
    %v215 = vmax.f32 %v195, 0.0
    %v216 = vmax.f32 %v198, 0.0
    %v217 = vpack.c.bf16 %v202, %v201
    %v218 = vpack.c.bf16 %v204, %v203
    %v219 = vpack.c.bf16 %v206, %v205
    %v220 = vpack.c.bf16 %v208, %v207
    %v221 = vpack.c.bf16 %v210, %v209
    %v222 = vpack.c.bf16 %v212, %v211
    %v223 = vpack.c.bf16 %v214, %v213
    %v224 = vpack.c.bf16 %v216, %v215
    %v225 = vpack.c.bf16 %v45, %v44
    %v226 = vpack.c.bf16 %v47, %v46
    %v227 = vpack.c.bf16 %v49, %v48
    %v228 = vpack.c.bf16 %v51, %v50
    %v229 = vpack.c.bf16 %v53, %v52
    %v230 = vpack.c.bf16 %v55, %v54
    %v231 = vpack.c.bf16 %v57, %v56
    %v232 = vpack.c.bf16 %v59, %v58
    %233 = vmatprep.subr.bf16.mxu0 0
    %234 = vmatpush1.bf16.msra.mxu0 %v225
    %235 = vmatprep.subr.bf16.mxu0 0
    %236 = vmatpush1.bf16.msra.mxu0 %v226
    %237 = vmatprep.subr.bf16.mxu0 0
    %238 = vmatpush1.bf16.msra.mxu0 %v227
    %239 = vmatprep.subr.bf16.mxu0 0
    %240 = vmatpush1.bf16.msra.mxu0 %v228
    %241 = vmatprep.subr.bf16.mxu0 0
    %242 = vmatpush1.bf16.msra.mxu0 %v229
    %243 = vmatprep.subr.bf16.mxu0 0
    %244 = vmatpush1.bf16.msra.mxu0 %v230
    %245 = vmatprep.subr.bf16.mxu0 0
    %246 = vmatpush1.bf16.msra.mxu0 %v231
    %247 = vmatprep.subr.bf16.mxu0 0
    %248 = vmatpush1.bf16.msra.mxu0 %v232
    %249 = vmatprep.subr.bf16.mxu0 0
    %250 = vmatpush1.bf16.msra.mxu0 0
    %251 = vmatprep.subr.bf16.mxu0 0
    %252 = vmatpush1.bf16.msra.mxu0 0
    %253 = vmatprep.subr.bf16.mxu0 0
    %254 = vmatpush1.bf16.msra.mxu0 0
    %255 = vmatprep.subr.bf16.mxu0 0
    %256 = vmatpush1.bf16.msra.mxu0 0
    %257 = vmatprep.subr.bf16.mxu0 0
    %258 = vmatpush1.bf16.msra.mxu0 0
    %259 = vmatprep.subr.bf16.mxu0 0
    %260 = vmatpush1.bf16.msra.mxu0 0
    %261 = vmatprep.subr.bf16.mxu0 0
    %262 = vmatpush1.bf16.msra.mxu0 0
    %263 = vmatprep.subr.bf16.mxu0 0
    %264 = vmatpush1.bf16.msra.mxu0 0
    %265 = vmatprep.mubr.bf16.mxu0 0
    %266 = vmatmul.mubr.bf16.gmra.mrb[0].mxu0 %v217
    %v267 = vpop.f32.mrb[0].mxu0
    %v268 = vadd.f32 0.0, %v267
    %v269 = vpop.f32.mrb[0].mxu0
    %v270 = vpop.f32.mrb[0].mxu0
    %v271 = vadd.f32 0.0, %v270
    %v272 = vpop.f32.mrb[0].mxu0
    %273 = vmatprep.mubr.bf16.mxu0 0
    %274 = vmatmul.mubr.bf16.gmra.mrb[0].mxu0 %v218
    %v275 = vpop.f32.mrb[0].mxu0
    %v276 = vadd.f32 0.0, %v275
    %v277 = vpop.f32.mrb[0].mxu0
    %v278 = vpop.f32.mrb[0].mxu0
    %v279 = vadd.f32 0.0, %v278
    %v280 = vpop.f32.mrb[0].mxu0
    %281 = vmatprep.mubr.bf16.mxu0 0
    %282 = vmatmul.mubr.bf16.gmra.mrb[0].mxu0 %v219
    %v283 = vpop.f32.mrb[0].mxu0
    %v284 = vadd.f32 0.0, %v283
    %v285 = vpop.f32.mrb[0].mxu0
    %v286 = vpop.f32.mrb[0].mxu0
    %v287 = vadd.f32 0.0, %v286
    %v288 = vpop.f32.mrb[0].mxu0
    %289 = vmatprep.mubr.bf16.mxu0 0
    %290 = vmatmul.mubr.bf16.gmra.mrb[0].mxu0 %v220
    %v291 = vpop.f32.mrb[0].mxu0
    %v292 = vadd.f32 0.0, %v291
    %v293 = vpop.f32.mrb[0].mxu0
    %v294 = vpop.f32.mrb[0].mxu0
    %v295 = vadd.f32 0.0, %v294
    %v296 = vpop.f32.mrb[0].mxu0
    %297 = vmatprep.mubr.bf16.mxu0 0
    %298 = vmatmul.mubr.bf16.gmra.mrb[0].mxu0 %v221
    %v299 = vpop.f32.mrb[0].mxu0
    %v300 = vadd.f32 0.0, %v299
    %v301 = vpop.f32.mrb[0].mxu0
    %v302 = vpop.f32.mrb[0].mxu0
    %v303 = vadd.f32 0.0, %v302
    %v304 = vpop.f32.mrb[0].mxu0
    %305 = vmatprep.mubr.bf16.mxu0 0
    %306 = vmatmul.mubr.bf16.gmra.mrb[0].mxu0 %v222
    %v307 = vpop.f32.mrb[0].mxu0
    %v308 = vadd.f32 0.0, %v307
    %v309 = vpop.f32.mrb[0].mxu0
    %v310 = vpop.f32.mrb[0].mxu0
    %v311 = vadd.f32 0.0, %v310
    %v312 = vpop.f32.mrb[0].mxu0
    %313 = vmatprep.mubr.bf16.mxu0 0
    %314 = vmatmul.mubr.bf16.gmra.mrb[0].mxu0 %v223
    %v315 = vpop.f32.mrb[0].mxu0
    %v316 = vadd.f32 0.0, %v315
    %v317 = vpop.f32.mrb[0].mxu0
    %v318 = vpop.f32.mrb[0].mxu0
    %v319 = vadd.f32 0.0, %v318
    %v320 = vpop.f32.mrb[0].mxu0
    %321 = vmatprep.mubr.bf16.mxu0 0
    %322 = vmatmul.mubr.bf16.gmra.mrb[0].mxu0 %v224
    %v323 = vpop.f32.mrb[0].mxu0
    %v324 = vadd.f32 0.0, %v323
    %v325 = vpop.f32.mrb[0].mxu0
    %v326 = vpop.f32.mrb[0].mxu0
    %v327 = vadd.f32 0.0, %v326
    %v328 = vpop.f32.mrb[0].mxu0
    %329 = vdwg.mxu0
    %v330 = vmax.f32 %v268, 0.0
    %v331 = vmax.f32 %v271, 0.0
    %v332 = vmax.f32 %v276, 0.0
    %v333 = vmax.f32 %v279, 0.0
    %v334 = vmax.f32 %v284, 0.0
    %v335 = vmax.f32 %v287, 0.0
    %v336 = vmax.f32 %v292, 0.0
    %v337 = vmax.f32 %v295, 0.0
    %v338 = vmax.f32 %v300, 0.0
    %v339 = vmax.f32 %v303, 0.0
    %v340 = vmax.f32 %v308, 0.0
    %v341 = vmax.f32 %v311, 0.0
    %v342 = vmax.f32 %v316, 0.0
    %v343 = vmax.f32 %v319, 0.0
    %v344 = vmax.f32 %v324, 0.0
    %v345 = vmax.f32 %v327, 0.0
    %v346 = vlaneseq
    %v347 = vshrl.u32 %v346, 7
    %v348 = vsub.s32 0, %v347
    %v349 = vrot.slane %v61, %v348
    %v350 = vmul.f32 %v330, %v349
    %v351 = vmul.f32 %v331, %v349
    %v352 = vmul.f32 %v332, %v349
    %v353 = vmul.f32 %v333, %v349
    %v354 = vmul.f32 %v334, %v349
    %v355 = vmul.f32 %v335, %v349
    %v356 = vmul.f32 %v336, %v349
    %v357 = vmul.f32 %v337, %v349
    %v358 = vmul.f32 %v338, %v349
    %v359 = vmul.f32 %v339, %v349
    %v360 = vmul.f32 %v340, %v349
    %v361 = vmul.f32 %v341, %v349
    %v362 = vmul.f32 %v342, %v349
    %v363 = vmul.f32 %v343, %v349
    %v364 = vmul.f32 %v344, %v349
    %v365 = vmul.f32 %v345, %v349
    %366 = vxpose.xlu0.b32.start [1/16] %v350, 128
    %367 = vxpose.xlu0.b32.cont [2/16] %v351, 128
    %368 = vxpose.xlu0.b32.cont [3/16] %v352, 128
    %369 = vxpose.xlu0.b32.cont [4/16] %v353, 128
    %370 = vxpose.xlu0.b32.cont [5/16] %v354, 128
    %371 = vxpose.xlu0.b32.cont [6/16] %v355, 128
    %372 = vxpose.xlu0.b32.cont [7/16] %v356, 128
    %373 = vxpose.xlu0.b32.cont [8/16] %v357, 128
    %374 = vxpose.xlu0.b32.cont [9/16] %v358, 128
    %375 = vxpose.xlu0.b32.cont [10/16] %v359, 128
    %376 = vxpose.xlu0.b32.cont [11/16] %v360, 128
    %377 = vxpose.xlu0.b32.cont [12/16] %v361, 128
    %378 = vxpose.xlu0.b32.cont [13/16] %v362, 128
    %379 = vxpose.xlu0.b32.cont [14/16] %v363, 128
    %380 = vxpose.xlu0.b32.cont [15/16] %v364, 128
    %381 = vxpose.xlu0.b32.end [16/16] %v365, 128
    %v382 = vpop.trf.xlu0
    %v383 = vpop.trf.xlu0
    %v384 = vpop.trf.xlu0
    %v385 = vpop.trf.xlu0
    %v386 = vpop.trf.xlu0
    %v387 = vpop.trf.xlu0
    %v388 = vpop.trf.xlu0
    %v389 = vpop.trf.xlu0
    %v390 = vpop.trf.xlu0
    %v391 = vpop.trf.xlu0
    %v392 = vpop.trf.xlu0
    %v393 = vpop.trf.xlu0
    %v394 = vpop.trf.xlu0
    %v395 = vpop.trf.xlu0
    %v396 = vpop.trf.xlu0
    %v397 = vpop.trf.xlu0
    %v398 = vadd.f32 %v382, %v383
    %v399 = vadd.f32 %v398, %v384
    %v400 = vadd.f32 %v399, %v385
    %v401 = vadd.f32 %v400, %v386
    %v402 = vadd.f32 %v401, %v387
    %v403 = vadd.f32 %v402, %v388
    %v404 = vadd.f32 %v403, %v389
    %v405 = vadd.f32 %v404, %v390
    %v406 = vadd.f32 %v405, %v391
    %v407 = vadd.f32 %v406, %v392
    %v408 = vadd.f32 %v407, %v393
    %v409 = vadd.f32 %v408, %v394
    %v410 = vadd.f32 %v409, %v395
    %v411 = vadd.f32 %v410, %v396
    %v412 = vadd.f32 %v411, %v397
    %v413 = vrot.slane %v412, 4
    %v414 = vadd.f32 %v412, %v413
    %v415 = vrot.slane %v414, 2
    %v416 = vadd.f32 %v414, %v415
    %v417 = vrot.slane %v416, 1
    %v418 = vadd.f32 %v416, %v417
    %419 = vst [vmem:[#allocation5] sm:$0x1] %v418
    // Predicated region
    $region14: #{tpu_custom_call.1} parent=1 // pred_check
      _
    $region15: #{tpu_custom_call.1} parent=1 // pred_check_branch
      %421 = sbr.rel (0) target = $region17
    $region16: #{tpu_custom_call.1} parent=1 // pred_region
      %s423 = ssub.s32 16, 16
      %424 = vsyncadd [#allocation4], %s423
      %s426 = sshll.u32 [#allocation5], 4
      %s427 = int_to_ptr.vmem [resolvable:$true] %s426
      %429 = dma.vmem_to_hbm [thread:$0]  %s427, 16, %s2, [#allocation4]
    $region17: #{tpu_custom_call.1} parent=1 // pred_fallthru
      _
    // Predicated region
    $region18: #{tpu_custom_call.1} parent=1 // pred_check
      _
    $region19: #{tpu_custom_call.1} parent=1 // pred_check_branch
      %431 = sbr.rel (0) target = $region21
    $region20: #{tpu_custom_call.1} parent=1 // pred_region
      %432 = dma.done [#allocation4], 16
    $region21: #{tpu_custom_call.1} parent=1 // pred_fallthru
      _
    %433 = vsyncpa [#allocation3], 1
    %434 = vsyncpa [#allocation4], 1

</llo_original>
